<compile_context>
chip_gen: v7x
topology: tpu7x:2x2x1
jax: 0.10.0
libtpu: 0.0.40
codegen_flags: <defaults>
</compile_context>

<pallas_src>
import functools

import jax
import jax.numpy as jnp
from jax.experimental import pallas as pl
from jax.experimental.pallas import tpu as pltpu


def _cdiv(a, b):
    return -(-a // b)


def _kd_kernel(stu_ref, tch_ref, lab_ref, out_ref, *,
               alpha, T, n_valid, n_classes, tile_rows, tiles_per_chunk, need_mask):
    stu = stu_ref[...].astype(jnp.float32)          # (R, C) student logits
    tch = tch_ref[...].astype(jnp.float32)          # (R, C) teacher logits
    lab = lab_ref[...]                              # (R, 1) int32 labels

    t_inv = 1.0 / T

    # ---- student: shared row max for the T=1 (CE) and T-scaled (KL) softmaxes ----
    m = jnp.max(stu, axis=1, keepdims=True)         # (R, 1)
    z = stu - m                                     # (R, C)

    # cross-entropy branch (temperature 1): ce = lse1 - z[label]
    lse1 = jnp.log(jnp.sum(jnp.exp(z), axis=1, keepdims=True))        # (R, 1)
    cls = jax.lax.broadcasted_iota(jnp.int32, z.shape, 1)
    z_lab = jnp.sum(jnp.where(cls == lab, z, 0.0), axis=1, keepdims=True)
    ce_row = lse1 - z_lab                                             # (R, 1)

    # KD branch (temperature T); max(stu * t_inv) == m * t_inv, so reuse z.
    zs = z * t_inv
    lse_s = jnp.log(jnp.sum(jnp.exp(zs), axis=1, keepdims=True))      # (R, 1)

    mt = jnp.max(tch, axis=1, keepdims=True)
    zt = (tch - mt) * t_inv
    et = jnp.exp(zt)
    st = jnp.sum(et, axis=1, keepdims=True)
    log_st = jnp.log(st)

    # sum_c p_t * (log p_t - log p_s) = (1/st) * sum_c et*(zt - zs) + (lse_s - log st)
    s1 = jnp.sum(et * (zt - zs), axis=1, keepdims=True)
    kl_row = s1 * pl.reciprocal(st, approx=True) + (lse_s - log_st)   # (R, 1)

    if need_mask:
        # Rows past the true batch (ragged edge block and/or surplus clamped tiles of
        # the parallel split) may hold garbage -> select (not multiply) so NaN/Inf die.
        tile_idx = pl.program_id(0) * tiles_per_chunk + pl.program_id(1)
        base = tile_idx * tile_rows
        rows = base + jax.lax.broadcasted_iota(jnp.int32, (tile_rows, 1), 0)
        valid = rows < n_valid
        ce_row = jnp.where(valid, ce_row, 0.0)
        kl_row = jnp.where(valid, kl_row, 0.0)

    # Fold the final weighting into the per-tile partial (Python-float constants).
    w_ce = (1.0 - alpha) / n_valid                  # F.cross_entropy 'mean' + (1-alpha)
    w_kl = (alpha * T * T) / (n_valid * n_classes)  # F.kl_div 'mean' over N*C + alpha*T^2
    tile_loss = w_ce * jnp.sum(ce_row) + w_kl * jnp.sum(kl_row)

    # Output block is resident across the inner (reduction) grid axis -> accumulator.
    @pl.when(pl.program_id(1) == 0)
    def _init():
        out_ref[...] = jnp.zeros_like(out_ref)

    out_ref[...] += tile_loss


def kd_loss(output_stu, output_tch, label, *, alpha, T,
            block_rows=None, parallel_chunks=2,
            vmem_limit_bytes=48 * 1024 * 1024):
    """Pallas implementation of the PyTorch KD module forward pass."""
    N, C = output_stu.shape
    assert output_tch.shape == (N, C)

    # --- pick the row tile: large enough to amortize per-step overhead, small enough
    #     that (2 inputs x 2 pipeline buffers, native dtype) + the f32 working set fit ---
    if block_rows is None:
        in_itemsize = max(jnp.dtype(output_stu.dtype).itemsize,
                          jnp.dtype(output_tch.dtype).itemsize)
        rows_stream = (12 * 1024 * 1024) // (4 * C * in_itemsize)  # pipelined input bufs
        rows_f32 = (768 * 1024) // C                               # f32 temporaries
        block_rows = min(rows_stream, rows_f32, 8192)
    n_rounded = _cdiv(N, 8) * 8
    tile_rows = int(min(max(int(block_rows), 8), n_rounded, 8192))
    tile_rows = max(8, tile_rows - tile_rows % 8)   # sublane dim multiple of 8

    # --- grid: (parallel super-chunks, row tiles per chunk) ---
    tiles_total = _cdiv(N, tile_rows)
    n_parallel = parallel_chunks if (parallel_chunks > 1 and tiles_total >= parallel_chunks) else 1
    tiles_per_chunk = _cdiv(tiles_total, n_parallel)
    need_mask = (n_parallel * tiles_per_chunk * tile_rows) != N

    lab2d = label.astype(jnp.int32).reshape(N, 1)

    kernel = functools.partial(
        _kd_kernel, alpha=float(alpha), T=float(T), n_valid=N, n_classes=C,
        tile_rows=tile_rows, tiles_per_chunk=tiles_per_chunk, need_mask=need_mask)

    last_tile = tiles_total - 1

    def row_map(p, i):
        # Clamp surplus steps of the parallel split onto the last real tile so the DMA
        # is always in-bounds; their contribution is zeroed by the in-kernel row mask.
        t = p * tiles_per_chunk + i
        return (jnp.minimum(t, last_tile), 0)

    out = pl.pallas_call(
        kernel,
        out_shape=jax.ShapeDtypeStruct((n_parallel, 8, 128), jnp.float32),
        grid_spec=pltpu.PrefetchScalarGridSpec(
            num_scalar_prefetch=0,
            grid=(n_parallel, tiles_per_chunk),
            in_specs=[
                pl.BlockSpec((tile_rows, C), row_map),   # student logits (native dtype)
                pl.BlockSpec((tile_rows, C), row_map),   # teacher logits (native dtype)
                pl.BlockSpec((tile_rows, 1), row_map),   # int32 labels
            ],
            out_specs=pl.BlockSpec((1, 8, 128), lambda p, i: (p, 0, 0)),
        ),
        compiler_params=pltpu.CompilerParams(
            dimension_semantics=("parallel", "arbitrary"),
            vmem_limit_bytes=vmem_limit_bytes,
        ),
    )(output_stu, output_tch, lab2d)

    # every element of a chunk's (8,128) block holds that chunk's partial sum
    return jnp.sum(out[:, 0, 0])


def _kd_ref(output_stu, output_tch, label, *, alpha, T):
    # Pure-JAX reference mirroring PyTorch semantics (sanity check only).
    log_p = jax.nn.log_softmax(output_stu, axis=1)
    ce = -jnp.mean(jnp.take_along_axis(log_p, label[:, None], axis=1))
    log_p_s = jax.nn.log_softmax(output_stu / T, axis=1)
    log_p_t = jax.nn.log_softmax(output_tch / T, axis=1)
    p_t = jnp.exp(log_p_t)
    kl = jnp.mean(p_t * (log_p_t - log_p_s))        # F.kl_div reduction='mean'
    return ce * (1.0 - alpha) + kl * T * T * alpha


if __name__ == "__main__":
    alpha, T = 0.7, 4.0
    N, C = 37, 128   # small demo: ragged batch (exercises edge-block masking), 128 classes

    key = jax.random.PRNGKey(0)
    k1, k2, k3 = jax.random.split(key, 3)
    output_stu = jax.random.normal(k1, (N, C), dtype=jnp.float32)
    output_tch = jax.random.normal(k2, (N, C), dtype=jnp.float32)
    label = jax.random.randint(k3, (N,), 0, C, dtype=jnp.int32)

    ref = _kd_ref(output_stu, output_tch, label, alpha=alpha, T=T)

    # 1) tiny tile: exercises the 2-D grid, parallel split, clamped surplus tiles and
    #    the ragged last block + row masking.
    loss_small = kd_loss(output_stu, output_tch, label, alpha=alpha, T=T, block_rows=8)
    loss_small = jax.block_until_ready(loss_small)
    assert jnp.allclose(loss_small, ref, atol=3e-4, rtol=3e-4), (loss_small, ref)

    # 2) default auto-sized tile: single edge block covering the whole (ragged) batch.
    loss_auto = kd_loss(output_stu, output_tch, label, alpha=alpha, T=T)
    loss_auto = jax.block_until_ready(loss_auto)
    assert jnp.allclose(loss_auto, ref, atol=3e-4, rtol=3e-4), (loss_auto, ref)

    print("KERNEL_OK")
</pallas_src>

<mosaic_0001>
module attributes {stable_mosaic.version = 11 : i64} {
  func.func @_kd_kernel(%arg0: i32, %arg1: i32, %arg2: memref<8x128xf32, #tpu.memory_space<vmem>>, %arg3: memref<8x128xf32, #tpu.memory_space<vmem>>, %arg4: memref<8x1xi32, #tpu.memory_space<vmem>>, %arg5: memref<1x8x128xf32, #tpu.memory_space<vmem>>) attributes {dimension_semantics = [#tpu.dimension_semantics<parallel>, #tpu.dimension_semantics<arbitrary>], iteration_bounds = array<i64: 2, 3>, scalar_prefetch = 0 : i64, scratch_operands = 0 : i64, tpu.core_type = #tpu.core_type<tc>, window_params = [{transform_indices = @transform_0, window_bounds = array<i64: 8, 128>}, {transform_indices = @transform_1, window_bounds = array<i64: 8, 128>}, {transform_indices = @transform_2, window_bounds = array<i64: 8, 1>}, {transform_indices = @transform_3, window_bounds = array<i64: 1, 8, 128>}]} {
    %c0 = arith.constant 0 : index
    %c0_0 = arith.constant 0 : index
    %0 = vector.load %arg2[%c0, %c0_0] : memref<8x128xf32, #tpu.memory_space<vmem>>, vector<8x128xf32>
    %c0_1 = arith.constant 0 : index
    %c0_2 = arith.constant 0 : index
    %1 = vector.load %arg3[%c0_1, %c0_2] : memref<8x128xf32, #tpu.memory_space<vmem>>, vector<8x128xf32>
    %c0_3 = arith.constant 0 : index
    %c0_4 = arith.constant 0 : index
    %2 = vector.load %arg4[%c0_3, %c0_4] : memref<8x1xi32, #tpu.memory_space<vmem>>, vector<8x1xi32>
    %cst = arith.constant dense<0xFF800000> : vector<8xf32>
    %3 = vector.multi_reduction <maximumf>, %0, %cst [1] : vector<8x128xf32> to vector<8xf32>
    %4 = vector.shape_cast %3 : vector<8xf32> to vector<8x1xf32>
    %5 = vector.broadcast %4 : vector<8x1xf32> to vector<8x128xf32>
    %6 = arith.subf %0, %5 : vector<8x128xf32>
    %7 = math.exp %6 : vector<8x128xf32>
    %cst_5 = arith.constant dense<0.000000e+00> : vector<8xf32>
    %8 = vector.multi_reduction <add>, %7, %cst_5 [1] : vector<8x128xf32> to vector<8xf32>
    %9 = vector.shape_cast %8 : vector<8xf32> to vector<8x1xf32>
    %10 = math.log %9 : vector<8x1xf32>
    %11 = tpu.iota {dimensions = array<i32: 1>} : vector<8x128xi32>
    %12 = vector.broadcast %2 : vector<8x1xi32> to vector<8x128xi32>
    %13 = arith.cmpi eq, %11, %12 : vector<8x128xi32>
    %cst_6 = arith.constant 0.000000e+00 : f32
    %14 = vector.broadcast %cst_6 : f32 to vector<8x128xf32>
    %15 = arith.select %13, %6, %14 : vector<8x128xi1>, vector<8x128xf32>
    %cst_7 = arith.constant dense<0.000000e+00> : vector<8xf32>
    %16 = vector.multi_reduction <add>, %15, %cst_7 [1] : vector<8x128xf32> to vector<8xf32>
    %17 = vector.shape_cast %16 : vector<8xf32> to vector<8x1xf32>
    %18 = arith.subf %10, %17 : vector<8x1xf32>
    %cst_8 = arith.constant 2.500000e-01 : f32
    %19 = vector.broadcast %cst_8 : f32 to vector<8x128xf32>
    %20 = arith.mulf %6, %19 : vector<8x128xf32>
    %21 = math.exp %20 : vector<8x128xf32>
    %cst_9 = arith.constant dense<0.000000e+00> : vector<8xf32>
    %22 = vector.multi_reduction <add>, %21, %cst_9 [1] : vector<8x128xf32> to vector<8xf32>
    %23 = vector.shape_cast %22 : vector<8xf32> to vector<8x1xf32>
    %24 = math.log %23 : vector<8x1xf32>
    %cst_10 = arith.constant dense<0xFF800000> : vector<8xf32>
    %25 = vector.multi_reduction <maximumf>, %1, %cst_10 [1] : vector<8x128xf32> to vector<8xf32>
    %26 = vector.shape_cast %25 : vector<8xf32> to vector<8x1xf32>
    %27 = vector.broadcast %26 : vector<8x1xf32> to vector<8x128xf32>
    %28 = arith.subf %1, %27 : vector<8x128xf32>
    %cst_11 = arith.constant 2.500000e-01 : f32
    %29 = vector.broadcast %cst_11 : f32 to vector<8x128xf32>
    %30 = arith.mulf %28, %29 : vector<8x128xf32>
    %31 = math.exp %30 : vector<8x128xf32>
    %cst_12 = arith.constant dense<0.000000e+00> : vector<8xf32>
    %32 = vector.multi_reduction <add>, %31, %cst_12 [1] : vector<8x128xf32> to vector<8xf32>
    %33 = vector.shape_cast %32 : vector<8xf32> to vector<8x1xf32>
    %34 = math.log %33 : vector<8x1xf32>
    %35 = arith.subf %30, %20 : vector<8x128xf32>
    %36 = arith.mulf %31, %35 : vector<8x128xf32>
    %cst_13 = arith.constant dense<0.000000e+00> : vector<8xf32>
    %37 = vector.multi_reduction <add>, %36, %cst_13 [1] : vector<8x128xf32> to vector<8xf32>
    %38 = vector.shape_cast %37 : vector<8xf32> to vector<8x1xf32>
    %39 = tpu.reciprocal %33 {approx = true} : vector<8x1xf32> -> vector<8x1xf32>
    %40 = arith.mulf %38, %39 : vector<8x1xf32>
    %41 = arith.subf %24, %34 : vector<8x1xf32>
    %42 = arith.addf %40, %41 : vector<8x1xf32>
    %c3_i32 = arith.constant 3 : i32
    %43 = arith.muli %arg0, %c3_i32 : i32
    %44 = arith.addi %43, %arg1 : i32
    %c8_i32 = arith.constant 8 : i32
    %45 = arith.muli %44, %c8_i32 : i32
    %46 = tpu.iota {dimensions = array<i32: 0>} : vector<8x1xi32>
    %47 = vector.broadcast %45 : i32 to vector<8x1xi32>
    %48 = arith.addi %47, %46 : vector<8x1xi32>
    %c37_i32 = arith.constant 37 : i32
    %49 = vector.broadcast %c37_i32 : i32 to vector<8x1xi32>
    %50 = arith.cmpi slt, %48, %49 : vector<8x1xi32>
    %cst_14 = arith.constant 0.000000e+00 : f32
    %51 = vector.broadcast %cst_14 : f32 to vector<8x1xf32>
    %52 = arith.select %50, %18, %51 : vector<8x1xi1>, vector<8x1xf32>
    %cst_15 = arith.constant 0.000000e+00 : f32
    %53 = vector.broadcast %cst_15 : f32 to vector<8x1xf32>
    %54 = arith.select %50, %42, %53 : vector<8x1xi1>, vector<8x1xf32>
    %55 = vector.shape_cast %52 : vector<8x1xf32> to vector<1x8x1xf32>
    %cst_16 = arith.constant dense<0.000000e+00> : vector<1xf32>
    %56 = vector.multi_reduction <add>, %55, %cst_16 [1, 2] : vector<1x8x1xf32> to vector<1xf32>
    %57 = vector.shape_cast %56 : vector<1xf32> to vector<1x1x1xf32>
    %58 = vector.extract %57[0, 0, 0] : f32 from vector<1x1x1xf32>
    %cst_17 = arith.constant 0.0081081083 : f32
    %59 = arith.mulf %cst_17, %58 : f32
    %60 = vector.shape_cast %54 : vector<8x1xf32> to vector<1x8x1xf32>
    %cst_18 = arith.constant dense<0.000000e+00> : vector<1xf32>
    %61 = vector.multi_reduction <add>, %60, %cst_18 [1, 2] : vector<1x8x1xf32> to vector<1xf32>
    %62 = vector.shape_cast %61 : vector<1xf32> to vector<1x1x1xf32>
    %63 = vector.extract %62[0, 0, 0] : f32 from vector<1x1x1xf32>
    %cst_19 = arith.constant 0.00236486481 : f32
    %64 = arith.mulf %cst_19, %63 : f32
    %65 = arith.addf %59, %64 : f32
    %c0_i32 = arith.constant 0 : i32
    %66 = arith.cmpi eq, %arg1, %c0_i32 : i32
    %67 = arith.extui %66 : i1 to i32
    %c0_i32_20 = arith.constant 0 : i32
    %68 = arith.cmpi ne, %67, %c0_i32_20 : i32
    scf.if %68 {
      %cst_27 = arith.constant 0.000000e+00 : f32
      %73 = vector.broadcast %cst_27 : f32 to vector<1x8x128xf32>
      %c0_28 = arith.constant 0 : index
      %c0_29 = arith.constant 0 : index
      %c0_30 = arith.constant 0 : index
      %74 = vector.load %arg5[%c0_28, %c0_29, %c0_30] : memref<1x8x128xf32, #tpu.memory_space<vmem>>, vector<1x8x128xf32>
      tpu.vector_store %arg5[%c0_28, %c0_29, %c0_30], %73 {strides = array<i32>} : memref<1x8x128xf32, #tpu.memory_space<vmem>>, vector<1x8x128xf32>,
    } else {
    }
    %c0_21 = arith.constant 0 : index
    %c0_22 = arith.constant 0 : index
    %c0_23 = arith.constant 0 : index
    %69 = vector.load %arg5[%c0_21, %c0_22, %c0_23] : memref<1x8x128xf32, #tpu.memory_space<vmem>>, vector<1x8x128xf32>
    %70 = vector.broadcast %65 : f32 to vector<1x8x128xf32>
    %71 = arith.addf %69, %70 : vector<1x8x128xf32>
    %c0_24 = arith.constant 0 : index
    %c0_25 = arith.constant 0 : index
    %c0_26 = arith.constant 0 : index
    %72 = vector.load %arg5[%c0_24, %c0_25, %c0_26] : memref<1x8x128xf32, #tpu.memory_space<vmem>>, vector<1x8x128xf32>
    tpu.vector_store %arg5[%c0_24, %c0_25, %c0_26], %71 {strides = array<i32>} : memref<1x8x128xf32, #tpu.memory_space<vmem>>, vector<1x8x128xf32>,
    return
  }
  func.func @transform_0(%arg0: i32, %arg1: i32) -> (i32, i32) {
    %c3_i32 = arith.constant 3 : i32
    %0 = arith.muli %arg0, %c3_i32 : i32
    %1 = arith.addi %0, %arg1 : i32
    %c4_i32 = arith.constant 4 : i32
    %2 = arith.minsi %1, %c4_i32 : i32
    %c0_i32 = arith.constant 0 : i32
    %c0_i32_0 = arith.constant 0 : i32
    return %2, %c0_i32 : i32, i32
  }
  func.func @transform_1(%arg0: i32, %arg1: i32) -> (i32, i32) {
    %c3_i32 = arith.constant 3 : i32
    %0 = arith.muli %arg0, %c3_i32 : i32
    %1 = arith.addi %0, %arg1 : i32
    %c4_i32 = arith.constant 4 : i32
    %2 = arith.minsi %1, %c4_i32 : i32
    %c0_i32 = arith.constant 0 : i32
    %c0_i32_0 = arith.constant 0 : i32
    return %2, %c0_i32 : i32, i32
  }
  func.func @transform_2(%arg0: i32, %arg1: i32) -> (i32, i32) {
    %c3_i32 = arith.constant 3 : i32
    %0 = arith.muli %arg0, %c3_i32 : i32
    %1 = arith.addi %0, %arg1 : i32
    %c4_i32 = arith.constant 4 : i32
    %2 = arith.minsi %1, %c4_i32 : i32
    %c0_i32 = arith.constant 0 : i32
    %c0_i32_0 = arith.constant 0 : i32
    return %2, %c0_i32 : i32, i32
  }
  func.func @transform_3(%arg0: i32, %arg1: i32) -> (i32, i32, i32) {
    %c0_i32 = arith.constant 0 : i32
    %c0_i32_0 = arith.constant 0 : i32
    %c0_i32_1 = arith.constant 0 : i32
    return %arg0, %c0_i32, %c0_i32_0 : i32, i32, i32
  }
}

</mosaic_0001>

<llo_original>
// kernel: tpu_custom_call.1
$region0: #{tpu_custom_call.1}
  #allocation0 [shape = 'u32[]', space=smem, size = 0x4, offset = 0x4, fixed_abs, tag = 'smem constant byte address 0x4 - core index']
  #allocation1 [shape = 'u32[144,128]{1,0:T(1,128)}', space=vmem, size = 0x12000, scoped, tag = 'internal scratch']
  %s0 = inlined_call_operand.vmem [shape: f32[37,128], index: 0, kind: input, shape index: {}]
  %s1 = inlined_call_operand.hbm [shape: f32[37,128], index: 1, kind: input, shape index: {}]
  %s2 = inlined_call_operand.vmem [shape: s32[37,1], index: 2, kind: input, shape index: {}]
  %s3 = inlined_call_operand.hbm [shape: f32[2,8,128], index: 3, kind: output, shape index: {}]
  %s4 = sld [smem:[#allocation0]]
  $region53: #{tpu_custom_call.1} parent=0
    _
  %s6 = ssub.s32 1, %s4
  %s7 = scalar_select 0, %s6, %s4
  $region1: #{tpu_custom_call.1} parent=0
    #allocation2 [shape = 'u8[8192]{0}', space=vmem, size = 0x2000, scoped, tag = 'input window, operand 1']
    #allocation3 [shape = 's32[2]{0}', space=sflag, size = 0x8, scoped, tag = 'scoped memory for tpu_custom_call.1']
    #allocation4 [shape = 's32[2]{0}', space=sflag, size = 0x8, scoped, tag = 'scoped memory for tpu_custom_call.1']
    #allocation5 [shape = 'u8[8192]{0}', space=vmem, size = 0x2000, scoped, tag = 'output window, operand 0']
    %8 = vsyncpa [#allocation3], 0
    %s9 = scalar_lea.sflag [#allocation3], 1
    %10 = vsyncpa %s9, 0
    %11 = vsyncpa [#allocation4], 0
    %s12 = scalar_lea.sflag [#allocation4], 1
    %13 = vsyncpa %s12, 0
    loop: start=0, step=1, limit=8
    $region2: #{tpu_custom_call.1} parent=1 // loop_pre_header
      _
    $region3: #{tpu_custom_call.1} parent=1 // loop_header
      %s15 = sphi 0, %s19
      %p16 = scmp.ge.s32.totalorder %s15, 8
      %s22 = sphi 0, %s34
      %s23 = sphi 0, %s30
      %s24 = sphi 0, %s22
      %s25 = sphi 0, %s23
      %s26 = sphi 0, %s24
      %s27 = sphi 0, %s25
      %s45 = sphi 0, %s47
      %s48 = sphi 0, %s45
      %s49 = sphi 0, %s48
      %s65 = sphi 0, %s49
      %s79 = sphi 0, %s81
      %s82 = sphi 0, %s79
      %s83 = sphi 0, %s82
      %s99 = sphi 0, %s83
      %s113 = sphi 0, %s115
      %s116 = sphi 0, %s113
      %s117 = sphi 0, %s116
      %s133 = sphi 0, %s117
      %s139 = sphi 0, %s141
      %s142 = sphi 0, %s139
      %s143 = sphi 0, %s142
      %s159 = sphi 0, %s143
    $region4: #{tpu_custom_call.1} parent=1 // loop_header_branch
      %18 = sbr.rel (%p16) target = $region8
    $region5: #{tpu_custom_call.1} parent=1 // loop_body
      %s20 = ssub.s32 %s15, 1
      %s21 = ssub.s32 %s15, 2
      %s28 = sadd.s32 1, %s23
      %p29 = scmp.ge.s32.totalorder %s28, 3
      %s30 = scalar_select %p29, 0, %s28
      %s31 = sadd.s32 1, %s22
      %s32 = scalar_select %p29, %s31, %s22
      %p33 = scmp.ge.s32.totalorder %s32, 2
      %s34 = scalar_select %p33, 0, %s32
      %s35 = smul.u32 %s22, 3
      %s36 = sadd.s32 %s35, %s23
      %p37 = scmp.lt.s32.totalorder %s36, 4
      %s38 = scalar_select %p37, %s36, 4
      %s39 = smul.u32 %s34, 3
      %s40 = sadd.s32 %s39, %s30
      %p41 = scmp.lt.s32.totalorder %s40, 4
      %s42 = scalar_select %p41, %s40, 4
      %s43 = ssub.s32 %s38, %s42
      %p44 = scmp.eq.s32.totalorder %s43, 0
      %s46 = sadd.s32 %s45, 1
      %s47 = scalar_select %p44, %s45, %s46
      %p50 = pneg %p44
      %p51 = scmp.eq.s32.totalorder %s15, 5
      %p52 = por %p50, %p51
      %p53 = scmp.ne.s32.totalorder %s45, %s48
      %p54 = scmp.eq.s32.totalorder %s15, 0
      %p55 = por %p53, %p54
      %p56 = scmp.ne.s32.totalorder %s45, %s48
      %p57 = scmp.eq.s32.totalorder %s20, 5
      %p58 = por %p56, %p57
      %p59 = scmp.ne.s32.totalorder %s48, %s49
      %p60 = scmp.eq.s32.totalorder %s20, 0
      %p61 = por %p59, %p60
      %p62 = scmp.ne.s32.totalorder %s48, %s49
      %p63 = scmp.eq.s32.totalorder %s21, 5
      %p64 = por %p62, %p63
      %p66 = scmp.ne.s32.totalorder %s49, %s65
      %p67 = scmp.eq.s32.totalorder %s21, 0
      %p68 = por %p66, %p67
      %s69 = smul.u32 %s22, 3
      %s70 = sadd.s32 %s69, %s23
      %p71 = scmp.lt.s32.totalorder %s70, 4
      %s72 = scalar_select %p71, %s70, 4
      %s73 = smul.u32 %s34, 3
      %s74 = sadd.s32 %s73, %s30
      %p75 = scmp.lt.s32.totalorder %s74, 4
      %s76 = scalar_select %p75, %s74, 4
      %s77 = ssub.s32 %s72, %s76
      %p78 = scmp.eq.s32.totalorder %s77, 0
      %s80 = sadd.s32 %s79, 1
      %s81 = scalar_select %p78, %s79, %s80
      %p84 = pneg %p78
      %p85 = scmp.eq.s32.totalorder %s15, 5
      %p86 = por %p84, %p85
      %p87 = scmp.ne.s32.totalorder %s79, %s82
      %p88 = scmp.eq.s32.totalorder %s15, 0
      %p89 = por %p87, %p88
      %p90 = scmp.ne.s32.totalorder %s79, %s82
      %p91 = scmp.eq.s32.totalorder %s20, 5
      %p92 = por %p90, %p91
      %p93 = scmp.ne.s32.totalorder %s82, %s83
      %p94 = scmp.eq.s32.totalorder %s20, 0
      %p95 = por %p93, %p94
      %p96 = scmp.ne.s32.totalorder %s82, %s83
      %p97 = scmp.eq.s32.totalorder %s21, 5
      %p98 = por %p96, %p97
      %p100 = scmp.ne.s32.totalorder %s83, %s99
      %p101 = scmp.eq.s32.totalorder %s21, 0
      %p102 = por %p100, %p101
      %s103 = smul.u32 %s22, 3
      %s104 = sadd.s32 %s103, %s23
      %p105 = scmp.lt.s32.totalorder %s104, 4
      %s106 = scalar_select %p105, %s104, 4
      %s107 = smul.u32 %s34, 3
      %s108 = sadd.s32 %s107, %s30
      %p109 = scmp.lt.s32.totalorder %s108, 4
      %s110 = scalar_select %p109, %s108, 4
      %s111 = ssub.s32 %s106, %s110
      %p112 = scmp.eq.s32.totalorder %s111, 0
      %s114 = sadd.s32 %s113, 1
      %s115 = scalar_select %p112, %s113, %s114
      %p118 = pneg %p112
      %p119 = scmp.eq.s32.totalorder %s15, 5
      %p120 = por %p118, %p119
      %p121 = scmp.ne.s32.totalorder %s113, %s116
      %p122 = scmp.eq.s32.totalorder %s15, 0
      %p123 = por %p121, %p122
      %p124 = scmp.ne.s32.totalorder %s113, %s116
      %p125 = scmp.eq.s32.totalorder %s20, 5
      %p126 = por %p124, %p125
      %p127 = scmp.ne.s32.totalorder %s116, %s117
      %p128 = scmp.eq.s32.totalorder %s20, 0
      %p129 = por %p127, %p128
      %p130 = scmp.ne.s32.totalorder %s116, %s117
      %p131 = scmp.eq.s32.totalorder %s21, 5
      %p132 = por %p130, %p131
      %p134 = scmp.ne.s32.totalorder %s117, %s133
      %p135 = scmp.eq.s32.totalorder %s21, 0
      %p136 = por %p134, %p135
      %s137 = ssub.s32 %s22, %s34
      %p138 = scmp.eq.s32.totalorder %s137, 0
      %s140 = sadd.s32 %s139, 1
      %s141 = scalar_select %p138, %s139, %s140
      %p144 = pneg %p138
      %p145 = scmp.eq.s32.totalorder %s15, 5
      %p146 = por %p144, %p145
      %p147 = scmp.ne.s32.totalorder %s139, %s142
      %p148 = scmp.eq.s32.totalorder %s15, 0
      %p149 = por %p147, %p148
      %p150 = scmp.ne.s32.totalorder %s139, %s142
      %p151 = scmp.eq.s32.totalorder %s20, 5
      %p152 = por %p150, %p151
      %p153 = scmp.ne.s32.totalorder %s142, %s143
      %p154 = scmp.eq.s32.totalorder %s20, 0
      %p155 = por %p153, %p154
      %p156 = scmp.ne.s32.totalorder %s142, %s143
      %p157 = scmp.eq.s32.totalorder %s21, 5
      %p158 = por %p156, %p157
      %p160 = scmp.ne.s32.totalorder %s143, %s159
      %p161 = scmp.eq.s32.totalorder %s21, 0
      %p162 = por %p160, %p161
      %p163 = scmp.le.s32.totalorder 1, %s15
      %p164 = scmp.lt.s32.totalorder %s15, 7
      %p165 = pnand %p163, %p164
      %p166 = pneg %p165
      // Predicated region
      $region9: #{tpu_custom_call.1} parent=5 // pred_check
        _
      $region10: #{tpu_custom_call.1} parent=5 // pred_check_branch
        %168 = sbr.rel (%p165) target = $region12
      $region11: #{tpu_custom_call.1} parent=5 // pred_region
        %s169 = ssub.s32 %s15, 1
      $region12: #{tpu_custom_call.1} parent=5 // pred_fallthru
        _
      %p170 = scmp.lt.s32.totalorder %s15, 6
      // Predicated region
      $region13: #{tpu_custom_call.1} parent=5 // pred_check
        %p171 = pneg %p170
      $region14: #{tpu_custom_call.1} parent=5 // pred_check_branch
        %173 = sbr.rel (%p171) target = $region16
      $region15: #{tpu_custom_call.1} parent=5 // pred_region
        // Predicated region
        $region17: #{tpu_custom_call.1} parent=15 // pred_check
          %p174 = pneg %p55
        $region18: #{tpu_custom_call.1} parent=15 // pred_check_branch
          %176 = sbr.rel (%p174) target = $region20
        $region19: #{tpu_custom_call.1} parent=15 // pred_region
          %s177 = smul.u32 %s22, 3
          %s178 = sadd.s32 %s177, %s23
          %p179 = scmp.lt.s32.totalorder %s178, 4
          %s180 = scalar_select %p179, %s178, 4
          %p181 = scmp.lt.s32.totalorder %s180, 4
          %s182 = scalar_select %p181, %s180, 4
          %s183 = smul.addr %s182, 8
          %s184 = scalar_lea.vmem %s0, %s183
          %s185 = smul.u32 %s22, 3
          %s186 = sadd.s32 %s185, %s23
          %p187 = scmp.lt.s32.totalorder %s186, 4
          %s188 = scalar_select %p187, %s186, 4
        $region20: #{tpu_custom_call.1} parent=15 // pred_fallthru
          _
        // Predicated region
        $region21: #{tpu_custom_call.1} parent=15 // pred_check
          %p189 = pneg %p89
        $region22: #{tpu_custom_call.1} parent=15 // pred_check_branch
          %191 = sbr.rel (%p189) target = $region24
        $region23: #{tpu_custom_call.1} parent=15 // pred_region
          %s192 = sand.u32 %s79, 1
          %s193 = scalar_lea.sflag [#allocation3], %s192
          %s194 = sand.u32 %s79, 1
          %s195 = smul.addr %s194, 8
          %s196 = scalar_lea.vmem [#allocation2], %s195
          %s197 = smul.u32 %s22, 3
          %s198 = sadd.s32 %s197, %s23
          %p199 = scmp.lt.s32.totalorder %s198, 4
          %s200 = scalar_select %p199, %s198, 4
          %s202 = ssub.s32 128, 128
          %203 = vsyncadd %s193, %s202
          %s204 = smul.addr %s200, 128
          %s205 = scalar_lea.hbm %s1, %s204
          %s207 = sshll.u32 %s196, 4
          %s208 = int_to_ptr.vmem [resolvable:$true] %s207
          %210 = dma.hbm_to_vmem [thread:$0]  %s205, 128, %s208, %s193
        $region24: #{tpu_custom_call.1} parent=15 // pred_fallthru
          _
        // Predicated region
        $region25: #{tpu_custom_call.1} parent=15 // pred_check
          %p211 = pneg %p123
        $region26: #{tpu_custom_call.1} parent=15 // pred_check_branch
          %213 = sbr.rel (%p211) target = $region28
        $region27: #{tpu_custom_call.1} parent=15 // pred_region
          %s214 = smul.u32 %s22, 3
          %s215 = sadd.s32 %s214, %s23
          %p216 = scmp.lt.s32.totalorder %s215, 4
          %s217 = scalar_select %p216, %s215, 4
          %p218 = scmp.lt.s32.totalorder %s217, 4
          %s219 = scalar_select %p218, %s217, 4
          %s220 = smul.addr %s219, 8
          %s221 = scalar_lea.vmem %s2, %s220
          %s222 = smul.u32 %s22, 3
          %s223 = sadd.s32 %s222, %s23
          %p224 = scmp.lt.s32.totalorder %s223, 4
          %s225 = scalar_select %p224, %s223, 4
        $region28: #{tpu_custom_call.1} parent=15 // pred_fallthru
          _
      $region16: #{tpu_custom_call.1} parent=5 // pred_fallthru
        _
      %p226 = scmp.le.s32.totalorder 1, %s15
      %p227 = scmp.lt.s32.totalorder %s15, 7
      %p228 = pnand %p226, %p227
      %p229 = pneg %p228
      // Predicated region
      $region29: #{tpu_custom_call.1} parent=5 // pred_check
        _
      $region30: #{tpu_custom_call.1} parent=5 // pred_check_branch
        %231 = sbr.rel (%p228) target = $region32
      $region31: #{tpu_custom_call.1} parent=5 // pred_region
        %s232 = ssub.s32 %s15, 1
        %s233 = sand.u32 %s82, 1
        %s234 = scalar_lea.sflag [#allocation3], %s233
        %s235 = sand.u32 %s82, 1
        %s236 = smul.addr %s235, 8
        %s237 = scalar_lea.vmem [#allocation2], %s236
        // Predicated region
        $region33: #{tpu_custom_call.1} parent=31 // pred_check
          %p238 = pneg %p95
        $region34: #{tpu_custom_call.1} parent=31 // pred_check_branch
          %240 = sbr.rel (%p238) target = $region36
        $region35: #{tpu_custom_call.1} parent=31 // pred_region
          %241 = dma.done %s234, 128
        $region36: #{tpu_custom_call.1} parent=31 // pred_fallthru
          _
        %s242 = smul.u32 %s24, 3
        %s243 = sadd.s32 %s242, %s25
        %p244 = scmp.lt.s32.totalorder %s243, 4
        %s245 = scalar_select %p244, %s243, 4
        %p246 = scmp.lt.s32.totalorder %s245, 4
        %s247 = scalar_select %p246, %s245, 4
        %s248 = smul.addr %s247, 8
        %s249 = scalar_lea.vmem %s0, %s248
        %p250 = pneg %p61
        %p251 = pneg %p58
        %s252 = sand.u32 %s82, 1
        %s253 = scalar_lea.sflag [#allocation3], %s252
        %s254 = sand.u32 %s82, 1
        %s255 = smul.addr %s254, 8
        %s256 = scalar_lea.vmem [#allocation2], %s255
        %p257 = pneg %p95
        %p258 = pneg %p92
        %s259 = smul.u32 %s24, 3
        %s260 = sadd.s32 %s259, %s25
        %p261 = scmp.lt.s32.totalorder %s260, 4
        %s262 = scalar_select %p261, %s260, 4
        %p263 = scmp.lt.s32.totalorder %s262, 4
        %s264 = scalar_select %p263, %s262, 4
        %s265 = smul.addr %s264, 8
        %s266 = scalar_lea.vmem %s2, %s265
        %p267 = pneg %p129
        %p268 = pneg %p126
        %p269 = pneg %p155
        %p270 = pneg %p152
        %s271 = sand.u32 %s142, 1
        %s272 = scalar_lea.sflag [#allocation4], %s271
        %s273 = sand.u32 %s142, 1
        %s274 = smul.addr %s273, 8
        %s275 = scalar_lea.vmem [#allocation5], %s274
        %s276 = smul.u32 %s24, 3
        %s277 = sadd.s32 %s276, %s25
        %p278 = scmp.lt.s32.totalorder %s277, 4
        %s279 = scalar_select %p278, %s277, 4
        %p280 = scmp.lt.s32.totalorder %s279, 4
        %s281 = scalar_select %p280, %s279, 4
        %s282 = smul.addr %s281, 8
        %s283 = scalar_lea.vmem %s0, %s282
        %s284 = smul.u32 %s24, 3
        %s285 = sadd.s32 %s284, %s25
        %p286 = scmp.lt.s32.totalorder %s285, 4
        %s287 = scalar_select %p286, %s285, 4
        %s288 = smul.u32 %s24, 3
        %s289 = sadd.s32 %s288, %s25
        %p290 = scmp.lt.s32.totalorder %s289, 4
        %s291 = scalar_select %p290, %s289, 4
        %s292 = smul.u32 %s24, 3
        %s293 = sadd.s32 %s292, %s25
        %p294 = scmp.lt.s32.totalorder %s293, 4
        %s295 = scalar_select %p294, %s293, 4
        %p296 = scmp.lt.s32.totalorder %s295, 4
        %s297 = scalar_select %p296, %s295, 4
        %s298 = smul.addr %s297, 8
        %s299 = scalar_lea.vmem %s2, %s298
        %s300 = smul.u32 %s24, 3
        %s301 = sadd.s32 %s300, %s25
        %p302 = scmp.lt.s32.totalorder %s301, 4
        %s303 = scalar_select %p302, %s301, 4
        %v304 = vld [vmem:[%s283] sm:$0xff]
        %v305 = vld [vmem:[%s237] sm:$0xff]
        %v306 = vld [vmem:[%s299] sm:$0xff]
        %307 = vmax.xlane.f32.xlu0 %v304
        %v308 = vpop.xlane.xlu0 %307
        %v309 = vsub.f32 %v304, %v308
        %v310 = vmul.f32 %v309, 1.442695
        %v311 = vpow.pop %v310
        %312 = vadd.xlane.f32.xlu0 %v311
        %v313 = vpop.xlane.xlu0 %312
        %v314 = vlog2.pop %v313
        %v315 = vmul.f32 %v314, 0.6931472
        %v316 = vlaneseq
        %v317 = vand.u32 %v316, 127
        %318 = vset.pattern.permute.xlu0 0
        %319 = vperm.xlu0 %318, %v306
        %v320 = vpop.permute.xlu0 %319
        %vm321 = vcmp.eq.s32.totalorder %v317, %v320
        %v322 = vsel %vm321, %v309, 0.0
        %323 = vadd.xlane.f32.xlu0 %v322
        %v324 = vpop.xlane.xlu0 %323
        %v325 = vsub.f32 %v315, %v324
        %v326 = vmul.f32 %v309, 0.25
        %v327 = vmul.f32 %v326, 1.442695
        %v328 = vpow.pop %v327
        %329 = vadd.xlane.f32.xlu0 %v328
        %v330 = vpop.xlane.xlu0 %329
        %v331 = vlog2.pop %v330
        %v332 = vmul.f32 %v331, 0.6931472
        %333 = vmax.xlane.f32.xlu0 %v305
        %v334 = vpop.xlane.xlu0 %333
        %v335 = vsub.f32 %v305, %v334
        %v336 = vmul.f32 %v335, 0.25
        %v337 = vmul.f32 %v336, 1.442695
        %v338 = vpow.pop %v337
        %339 = vadd.xlane.f32.xlu0 %v338
        %v340 = vpop.xlane.xlu0 %339
        %v341 = vlog2.pop %v340
        %v342 = vmul.f32 %v341, 0.6931472
        %v343 = vsub.f32 %v336, %v326
        %v344 = vmul.f32 %v338, %v343
        %345 = vadd.xlane.f32.xlu0 %v344
        %v346 = vpop.xlane.xlu0 %345
        %v347 = vrcp.pop %v340
        %v348 = vmul.f32 %v346, %v347
        %v349 = vsub.f32 %v332, %v342
        %v350 = vadd.f32 %v348, %v349
        %s351 = smul.u32 %s24, 3
        %s352 = sadd.s32 %s351, %s25
        %s353 = smul.u32 %s352, 8
        %v354 = vlaneseq
        %v355 = vshrl.u32 %v354, 7
        %v356 = vstv %s353
        %v357 = vadd.s32 %v356, %v355
        %vm358 = vcmp.lt.s32.totalorder %v357, 37
        %v359 = vsel %vm358, %v325, 0.0
        %v360 = vsel %vm358, %v350, 0.0
        %vm361 = vcmask 7168
        %v362 = vsel %vm361, %v359, 0.0
        %363 = vadd.xlane.f32.xlu0 %v362
        %v364 = vpop.xlane.xlu0 %363
        %v365 = vrot.slane %v364, 4
        %v366 = vadd.f32 %v364, %v365
        %v367 = vrot.slane %v366, 2
        %v368 = vadd.f32 %v366, %v367
        %v369 = vrot.slane %v368, 1
        %v370 = vadd.f32 %v368, %v369
        %s371 = vtos %v370
        %s372 = smul.f32 %s371, 0.008108108
        %v373 = vsel %vm361, %v360, 0.0
        %374 = vadd.xlane.f32.xlu0 %v373
        %v375 = vpop.xlane.xlu0 %374
        %v376 = vrot.slane %v375, 4
        %v377 = vadd.f32 %v375, %v376
        %v378 = vrot.slane %v377, 2
        %v379 = vadd.f32 %v377, %v378
        %v380 = vrot.slane %v379, 1
        %v381 = vadd.f32 %v379, %v380
        %s382 = vtos %v381
        %s383 = smul.f32 %s382, 0.0023648648
        %s384 = sadd.f32 %s372, %s383
        %p385 = scmp.eq.s32.totalorder %s25, 0
        // Predicated region
        $region37: #{tpu_custom_call.1} parent=31 // pred_check
          %p386 = pneg %p385
        $region38: #{tpu_custom_call.1} parent=31 // pred_check_branch
          %388 = sbr.rel (%p386) target = $region40
        $region39: #{tpu_custom_call.1} parent=31 // pred_region
          %389 = vst [vmem:[%s275] sm:$0xff] 0.0
        $region40: #{tpu_custom_call.1} parent=31 // pred_fallthru
          _
        %v390 = vld [vmem:[%s275] sm:$0xff]
        %v391 = vstv %s384
        %v392 = vadd.f32 %v390, %v391
        %393 = vst [vmem:[%s275] sm:$0xff] %v392
        %s394 = sand.u32 %s142, 1
        %s395 = scalar_lea.sflag [#allocation4], %s394
        %s396 = sand.u32 %s142, 1
        %s397 = smul.addr %s396, 8
        %s398 = scalar_lea.vmem [#allocation5], %s397
        // Predicated region
        $region41: #{tpu_custom_call.1} parent=31 // pred_check
          %p399 = pneg %p152
        $region42: #{tpu_custom_call.1} parent=31 // pred_check_branch
          %401 = sbr.rel (%p399) target = $region44
        $region43: #{tpu_custom_call.1} parent=31 // pred_region
          %s403 = ssub.s32 128, 128
          %404 = vsyncadd %s395, %s403
          %s405 = smul.addr %s24, 128
          %s406 = scalar_lea.hbm %s3, %s405
          %s408 = sshll.u32 %s398, 4
          %s409 = int_to_ptr.vmem [resolvable:$true] %s408
          %411 = dma.vmem_to_hbm [thread:$0]  %s409, 128, %s406, %s395
        $region44: #{tpu_custom_call.1} parent=31 // pred_fallthru
          _
      $region32: #{tpu_custom_call.1} parent=5 // pred_fallthru
        _
      %p412 = scmp.le.s32.totalorder 2, %s15
      // Predicated region
      $region45: #{tpu_custom_call.1} parent=5 // pred_check
        %p413 = pneg %p412
      $region46: #{tpu_custom_call.1} parent=5 // pred_check_branch
        %415 = sbr.rel (%p413) target = $region48
      $region47: #{tpu_custom_call.1} parent=5 // pred_region
        %s416 = ssub.s32 %s15, 2
        // Predicated region
        $region49: #{tpu_custom_call.1} parent=47 // pred_check
          %p417 = pneg %p158
        $region50: #{tpu_custom_call.1} parent=47 // pred_check_branch
          %419 = sbr.rel (%p417) target = $region52
        $region51: #{tpu_custom_call.1} parent=47 // pred_region
          %s420 = sand.u32 %s143, 1
          %s421 = scalar_lea.sflag [#allocation4], %s420
          %s422 = sand.u32 %s143, 1
          %s423 = smul.addr %s422, 8
          %s424 = scalar_lea.vmem [#allocation5], %s423
          %425 = dma.done %s421, 128
        $region52: #{tpu_custom_call.1} parent=47 // pred_fallthru
          _
      $region48: #{tpu_custom_call.1} parent=5 // pred_fallthru
        _
    $region6: #{tpu_custom_call.1} parent=1 // loop_footer
      %s19 = sadd.s32 1, %s15
    $region7: #{tpu_custom_call.1} parent=1 // loop_footer_branch
      %14 = sbr.rel target = $region3
    $region8: #{tpu_custom_call.1} parent=1 // loop_exit
      _
    %426 = vsyncpa [#allocation3], 1
    %s427 = scalar_lea.sflag [#allocation3], 1
    %428 = vsyncpa %s427, 1
    %429 = vsyncpa [#allocation4], 1
    %s430 = scalar_lea.sflag [#allocation4], 1
    %431 = vsyncpa %s430, 1

</llo_original>
